<compile_context>
chip_gen: v7x
topology: tpu7x:2x2x1
jax: 0.10.0
libtpu: 0.0.40
codegen_flags: <defaults>
</compile_context>

<pallas_src>
import functools

import jax
import jax.numpy as jnp
from jax import lax
from jax.experimental import pallas as pl
from jax.experimental.pallas import tpu as pltpu


def _neighbor_sum_minor(u, axis):
    """u[i-1] + u[i+1] along a sublane/lane axis, replicate-edge (Neumann) BC.

    XLU rolls + one VPU select per shift; no sublane/lane concatenates.
    """
    n = u.shape[axis]
    if n == 1:
        return u + u                        # degenerate axis: 2u (cancels with center)
    idx = lax.broadcasted_iota(jnp.int32, u.shape, axis)
    fwd = pltpu.roll(u, n - 1, axis=axis)   # fwd[i] = u[i+1]  (wraps at i = n-1)
    bwd = pltpu.roll(u, 1, axis=axis)       # bwd[i] = u[i-1]  (wraps at i = 0)
    fwd = jnp.where(idx == n - 1, u, fwd)   # Neumann: u[n]  := u[n-1]
    bwd = jnp.where(idx == 0, u, bwd)       # Neumann: u[-1] := u[0]
    return fwd + bwd


def _fkpp_kernel(u_ref, ulo_ref, uhi_ref, k_ref, du_ref, *,
                 cz, cy, cx, inv_theta, center):
    """Fisher–KPP RHS for one (TS, Y, X) Z-slab of one batch volume.

    u_ref, k_ref, du_ref : VMEM blocks (TS, Y, X)  (batch dim squeezed away).
    ulo_ref, uhi_ref     : (1, Y, X) halo planes: Z-neighbors of the slab's
                           first / last row (edge-clamped => Neumann BC).
    cz, cy, cx           : static D / h_axis^2 coefficients.
    center               : static 2*(cz+cy+cx), folded into the reaction mul.
    """
    u = u_ref[...].astype(jnp.float32)
    k = k_ref[...].astype(jnp.float32)
    ts = u.shape[0]

    # Logistic growth rate r(x) = k * (1 - u / theta).
    if inv_theta == 1.0:
        r = k * (1.0 - u)
    else:
        r = k * (1.0 - u * inv_theta)

    # In-plane (Y, X) neighbor sums via XLU rolls; one scalar mul if uniform.
    if cy == cx:
        minor = cy * (_neighbor_sum_minor(u, 1) + _neighbor_sum_minor(u, 2))
    else:
        minor = (cy * _neighbor_sum_minor(u, 1)
                 + cx * _neighbor_sum_minor(u, 2))

    # Reaction + in-plane diffusion; the "-2u" center terms of all three axes
    # are folded into the single (r - center) multiply.
    base = u * (r - center) + minor

    # Z-neighbor contribution: direct slab adds, no concatenates / full temps.
    ulo = ulo_ref[...].astype(jnp.float32)   # neighbor below local row 0
    uhi = uhi_ref[...].astype(jnp.float32)   # neighbor above local row ts-1

    if ts == 1:
        du_ref[...] = (base + cz * (ulo + uhi)).astype(du_ref.dtype)
        return

    if ts > 2:
        du_ref[pl.ds(1, ts - 2), :, :] = (
            base[1:ts - 1] + cz * (u[0:ts - 2] + u[2:ts])
        ).astype(du_ref.dtype)
    du_ref[pl.ds(0, 1), :, :] = (
        base[0:1] + cz * (ulo + u[1:2])).astype(du_ref.dtype)
    du_ref[pl.ds(ts - 1, 1), :, :] = (
        base[ts - 1:ts] + cz * (u[ts - 2:ts - 1] + uhi)).astype(du_ref.dtype)


def _pick_slab_rows(z, plane_bytes, target_bytes=2 << 20):
    """Largest divisor of z whose slab stays under target_bytes (>=1)."""
    best = 1
    for d in range(1, z + 1):
        if z % d == 0 and d * plane_bytes <= target_bytes:
            best = d
    return best


def tumor_growth_rhs(t, u, k_map, *, diffusivity=0.05, carrying_capacity=1.0,
                     spacing=(1.0, 1.0, 1.0)):
    """forward(t, u) -> du/dt.

    t: (B, 1) time points. The Fisher–KPP RHS is autonomous, so t does not
       enter the computation (mirrors the reference interface where t is an
       argument to forward but the dynamics are time-invariant).
    u: (B, Z, Y, X) tumor cellularity field (f32 or bf16).
    k_map: (B, Z, Y, X) per-voxel proliferation rate (model parameter).
    """
    del t  # autonomous system
    B, Z, Y, X = u.shape
    out_dtype = u.dtype
    in_itemsize = jnp.dtype(u.dtype).itemsize
    out_itemsize = jnp.dtype(out_dtype).itemsize

    # --- Z-slab tiling -------------------------------------------------------
    plane_bytes = Y * X * in_itemsize
    ts = _pick_slab_rows(Z, plane_bytes)
    # Give the grid >= 2 independent work units (v7x has 2 TensorCores).
    if B * (Z // ts) < 2 and Z >= 2:
        half = 1
        for d in range(1, Z // 2 + 1):
            if Z % d == 0:
                half = d
        ts = half
    nz = Z // ts

    # Fold diffusivity and grid spacing into one static coefficient per axis.
    cz = float(diffusivity) / float(spacing[0]) ** 2
    cy = float(diffusivity) / float(spacing[1]) ** 2
    cx = float(diffusivity) / float(spacing[2]) ** 2
    center = 2.0 * (cz + cy + cx)

    kernel = functools.partial(
        _fkpp_kernel, cz=cz, cy=cy, cx=cx,
        inv_theta=float(1.0 / carrying_capacity), center=center)

    # --- BlockSpecs (full Y/X extents -> no padding, no (8,128) issue) -------
    slab_block = (pl.Squeezed(), ts, Y, X)
    plane_block = (pl.Squeezed(), 1, Y, X)

    def slab_idx(b, zi):
        return (b, zi, 0, 0)

    def lo_idx(b, zi):           # Z-neighbor below the slab (clamped => Neumann)
        return (b, jnp.maximum(zi * ts - 1, 0), 0, 0)

    def hi_idx(b, zi):           # Z-neighbor above the slab (clamped => Neumann)
        return (b, jnp.minimum(zi * ts + ts, Z - 1), 0, 0)

    # --- VMEM budget: double-buffered blocks + f32 temporaries + headroom ----
    slab_elems = ts * Y * X
    block_bytes = ((2 * slab_elems + 2 * Y * X) * in_itemsize
                   + slab_elems * out_itemsize)
    vmem_needed = 2 * block_bytes + 8 * slab_elems * 4
    vmem_limit = int(min(max(vmem_needed + (16 << 20), 32 << 20), 100 << 20))

    n_vox = B * Z * Y * X
    cost = pl.CostEstimate(
        flops=22 * n_vox,
        transcendentals=0,
        bytes_accessed=n_vox * (2 * in_itemsize + out_itemsize)
        + B * nz * 2 * Y * X * in_itemsize)

    out = pl.pallas_call(
        kernel,
        out_shape=jax.ShapeDtypeStruct((B, Z, Y, X), out_dtype),
        grid=(B, nz),
        in_specs=[pl.BlockSpec(slab_block, slab_idx),    # u slab
                  pl.BlockSpec(plane_block, lo_idx),     # u halo below
                  pl.BlockSpec(plane_block, hi_idx),     # u halo above
                  pl.BlockSpec(slab_block, slab_idx)],   # k slab
        out_specs=pl.BlockSpec(slab_block, slab_idx),
        compiler_params=pltpu.CompilerParams(
            dimension_semantics=("parallel", "parallel"),
            vmem_limit_bytes=vmem_limit),
        cost_estimate=cost,
    )(u, u, u, k_map)
    return out


def _reference_rhs(u, k_map, diffusivity, carrying_capacity, spacing):
    """Pure-JAX reference for correctness checking."""
    u = u.astype(jnp.float32)
    k_map = k_map.astype(jnp.float32)
    lap = jnp.zeros_like(u)
    for ax, s in zip((1, 2, 3), spacing):
        fwd = jnp.concatenate(
            [lax.slice_in_dim(u, 1, u.shape[ax], axis=ax),
             lax.slice_in_dim(u, u.shape[ax] - 1, u.shape[ax], axis=ax)], axis=ax)
        bwd = jnp.concatenate(
            [lax.slice_in_dim(u, 0, 1, axis=ax),
             lax.slice_in_dim(u, 0, u.shape[ax] - 1, axis=ax)], axis=ax)
        lap = lap + (fwd + bwd - 2.0 * u) / (s * s)
    reaction = k_map * u * (1.0 - u / carrying_capacity)
    return diffusivity * lap + reaction


if __name__ == "__main__":
    # Lane-dense demo shape: X = 128 maps the full 128-lane axis.
    B, Z, Y, X = 2, 8, 16, 128

    key = jax.random.PRNGKey(0)
    k_u, k_k = jax.random.split(key)

    # Deterministic synthetic inputs / parameters.
    t = jnp.zeros((B, 1), dtype=jnp.float32)
    u = jax.random.uniform(k_u, (B, Z, Y, X), dtype=jnp.float32)            # cellularity in [0,1)
    k_map = 0.1 * jax.random.uniform(k_k, (B, Z, Y, X), dtype=jnp.float32)  # proliferation rates

    diffusivity = 0.05
    carrying_capacity = 1.0
    spacing = (1.0, 1.0, 1.0)

    du_dt = tumor_growth_rhs(
        t, u, k_map,
        diffusivity=diffusivity,
        carrying_capacity=carrying_capacity,
        spacing=spacing,
    )
    du_dt = jax.block_until_ready(du_dt)

    ref = _reference_rhs(u, k_map, diffusivity, carrying_capacity, spacing)
    assert du_dt.shape == u.shape and du_dt.dtype == u.dtype
    assert jnp.allclose(du_dt, ref, atol=1e-5, rtol=1e-5)

    print("KERNEL_OK")
</pallas_src>

<mosaic_0001>
module attributes {stable_mosaic.version = 11 : i64} {
  func.func @_fkpp_kernel(%arg0: i32, %arg1: i32, %arg2: memref<1x8x16x128xf32, #tpu.memory_space<vmem>>, %arg3: memref<1x1x16x128xf32, #tpu.memory_space<vmem>>, %arg4: memref<1x1x16x128xf32, #tpu.memory_space<vmem>>, %arg5: memref<1x8x16x128xf32, #tpu.memory_space<vmem>>, %arg6: memref<1x8x16x128xf32, #tpu.memory_space<vmem>>) attributes {dimension_semantics = [#tpu.dimension_semantics<parallel>, #tpu.dimension_semantics<parallel>], iteration_bounds = array<i64: 2, 1>, scalar_prefetch = 0 : i64, scratch_operands = 0 : i64, tpu.core_type = #tpu.core_type<tc>, window_params = [{transform_indices = @transform_0, window_bounds = array<i64: 1, 8, 16, 128>}, {transform_indices = @transform_1, window_bounds = array<i64: 1, 1, 16, 128>}, {transform_indices = @transform_2, window_bounds = array<i64: 1, 1, 16, 128>}, {transform_indices = @transform_3, window_bounds = array<i64: 1, 8, 16, 128>}, {transform_indices = @transform_4, window_bounds = array<i64: 1, 8, 16, 128>}]} {
    %c0 = arith.constant 0 : index
    %c0_0 = arith.constant 0 : index
    %c0_1 = arith.constant 0 : index
    %c0_2 = arith.constant 0 : index
    %0 = vector.load %arg2[%c0, %c0_0, %c0_1, %c0_2] : memref<1x8x16x128xf32, #tpu.memory_space<vmem>>, vector<1x8x16x128xf32>
    %1 = vector.shape_cast %0 : vector<1x8x16x128xf32> to vector<8x16x128xf32>
    %c0_3 = arith.constant 0 : index
    %c0_4 = arith.constant 0 : index
    %c0_5 = arith.constant 0 : index
    %c0_6 = arith.constant 0 : index
    %2 = vector.load %arg5[%c0_3, %c0_4, %c0_5, %c0_6] : memref<1x8x16x128xf32, #tpu.memory_space<vmem>>, vector<1x8x16x128xf32>
    %3 = vector.shape_cast %2 : vector<1x8x16x128xf32> to vector<8x16x128xf32>
    %cst = arith.constant 1.000000e+00 : f32
    %4 = vector.broadcast %cst : f32 to vector<8x16x128xf32>
    %5 = arith.subf %4, %1 : vector<8x16x128xf32>
    %6 = arith.mulf %3, %5 : vector<8x16x128xf32>
    %7 = tpu.iota {dimensions = array<i32: 1>} : vector<8x16x128xi32>
    %c15_i32 = arith.constant 15 : i32
    %8 = tpu.dynamic_rotate %1 by %c15_i32 dim 1 : vector<8x16x128xf32>, i32 -> vector<8x16x128xf32>
    %c1_i32 = arith.constant 1 : i32
    %9 = tpu.dynamic_rotate %1 by %c1_i32 dim 1 : vector<8x16x128xf32>, i32 -> vector<8x16x128xf32>
    %c15_i32_7 = arith.constant 15 : i32
    %10 = vector.broadcast %c15_i32_7 : i32 to vector<8x16x128xi32>
    %11 = arith.cmpi eq, %7, %10 : vector<8x16x128xi32>
    %12 = arith.select %11, %1, %8 : vector<8x16x128xi1>, vector<8x16x128xf32>
    %c0_i32 = arith.constant 0 : i32
    %13 = vector.broadcast %c0_i32 : i32 to vector<8x16x128xi32>
    %14 = arith.cmpi eq, %7, %13 : vector<8x16x128xi32>
    %15 = arith.select %14, %1, %9 : vector<8x16x128xi1>, vector<8x16x128xf32>
    %16 = arith.addf %12, %15 : vector<8x16x128xf32>
    %17 = tpu.iota {dimensions = array<i32: 2>} : vector<8x16x128xi32>
    %c127_i32 = arith.constant 127 : i32
    %18 = tpu.dynamic_rotate %1 by %c127_i32 dim 2 : vector<8x16x128xf32>, i32 -> vector<8x16x128xf32>
    %c1_i32_8 = arith.constant 1 : i32
    %19 = tpu.dynamic_rotate %1 by %c1_i32_8 dim 2 : vector<8x16x128xf32>, i32 -> vector<8x16x128xf32>
    %c127_i32_9 = arith.constant 127 : i32
    %20 = vector.broadcast %c127_i32_9 : i32 to vector<8x16x128xi32>
    %21 = arith.cmpi eq, %17, %20 : vector<8x16x128xi32>
    %22 = arith.select %21, %1, %18 : vector<8x16x128xi1>, vector<8x16x128xf32>
    %c0_i32_10 = arith.constant 0 : i32
    %23 = vector.broadcast %c0_i32_10 : i32 to vector<8x16x128xi32>
    %24 = arith.cmpi eq, %17, %23 : vector<8x16x128xi32>
    %25 = arith.select %24, %1, %19 : vector<8x16x128xi1>, vector<8x16x128xf32>
    %26 = arith.addf %22, %25 : vector<8x16x128xf32>
    %27 = arith.addf %16, %26 : vector<8x16x128xf32>
    %cst_11 = arith.constant 5.000000e-02 : f32
    %28 = vector.broadcast %cst_11 : f32 to vector<8x16x128xf32>
    %29 = arith.mulf %28, %27 : vector<8x16x128xf32>
    %cst_12 = arith.constant 3.000000e-01 : f32
    %30 = vector.broadcast %cst_12 : f32 to vector<8x16x128xf32>
    %31 = arith.subf %6, %30 : vector<8x16x128xf32>
    %32 = arith.mulf %1, %31 : vector<8x16x128xf32>
    %33 = arith.addf %32, %29 : vector<8x16x128xf32>
    %c0_13 = arith.constant 0 : index
    %c0_14 = arith.constant 0 : index
    %c0_15 = arith.constant 0 : index
    %c0_16 = arith.constant 0 : index
    %34 = vector.load %arg3[%c0_13, %c0_14, %c0_15, %c0_16] : memref<1x1x16x128xf32, #tpu.memory_space<vmem>>, vector<1x1x16x128xf32>
    %35 = vector.shape_cast %34 : vector<1x1x16x128xf32> to vector<1x16x128xf32>
    %c0_17 = arith.constant 0 : index
    %c0_18 = arith.constant 0 : index
    %c0_19 = arith.constant 0 : index
    %c0_20 = arith.constant 0 : index
    %36 = vector.load %arg4[%c0_17, %c0_18, %c0_19, %c0_20] : memref<1x1x16x128xf32, #tpu.memory_space<vmem>>, vector<1x1x16x128xf32>
    %37 = vector.shape_cast %36 : vector<1x1x16x128xf32> to vector<1x16x128xf32>
    %38 = vector.extract_strided_slice %33 {offsets = [1, 0, 0], sizes = [6, 16, 128], strides = [1, 1, 1]} : vector<8x16x128xf32> to vector<6x16x128xf32>
    %39 = vector.extract_strided_slice %1 {offsets = [0, 0, 0], sizes = [6, 16, 128], strides = [1, 1, 1]} : vector<8x16x128xf32> to vector<6x16x128xf32>
    %40 = vector.extract_strided_slice %1 {offsets = [2, 0, 0], sizes = [6, 16, 128], strides = [1, 1, 1]} : vector<8x16x128xf32> to vector<6x16x128xf32>
    %41 = arith.addf %39, %40 : vector<6x16x128xf32>
    %cst_21 = arith.constant 5.000000e-02 : f32
    %42 = vector.broadcast %cst_21 : f32 to vector<6x16x128xf32>
    %43 = arith.mulf %42, %41 : vector<6x16x128xf32>
    %44 = arith.addf %38, %43 : vector<6x16x128xf32>
    %c0_22 = arith.constant 0 : index
    %c1 = arith.constant 1 : index
    %c0_23 = arith.constant 0 : index
    %c0_24 = arith.constant 0 : index
    %45 = vector.load %arg6[%c0_22, %c1, %c0_23, %c0_24] : memref<1x8x16x128xf32, #tpu.memory_space<vmem>>, vector<1x6x16x128xf32>
    %46 = vector.shape_cast %45 : vector<1x6x16x128xf32> to vector<6x16x128xf32>
    %47 = vector.shape_cast %44 : vector<6x16x128xf32> to vector<1x6x16x128xf32>
    tpu.vector_store %arg6[%c0_22, %c1, %c0_23, %c0_24], %47 {strides = array<i32>} : memref<1x8x16x128xf32, #tpu.memory_space<vmem>>, vector<1x6x16x128xf32>,
    %48 = vector.extract_strided_slice %33 {offsets = [0, 0, 0], sizes = [1, 16, 128], strides = [1, 1, 1]} : vector<8x16x128xf32> to vector<1x16x128xf32>
    %49 = vector.extract_strided_slice %1 {offsets = [1, 0, 0], sizes = [1, 16, 128], strides = [1, 1, 1]} : vector<8x16x128xf32> to vector<1x16x128xf32>
    %50 = arith.addf %35, %49 : vector<1x16x128xf32>
    %cst_25 = arith.constant 5.000000e-02 : f32
    %51 = vector.broadcast %cst_25 : f32 to vector<1x16x128xf32>
    %52 = arith.mulf %51, %50 : vector<1x16x128xf32>
    %53 = arith.addf %48, %52 : vector<1x16x128xf32>
    %c0_26 = arith.constant 0 : index
    %c0_27 = arith.constant 0 : index
    %c0_28 = arith.constant 0 : index
    %c0_29 = arith.constant 0 : index
    %54 = vector.load %arg6[%c0_26, %c0_27, %c0_28, %c0_29] : memref<1x8x16x128xf32, #tpu.memory_space<vmem>>, vector<1x1x16x128xf32>
    %55 = vector.shape_cast %54 : vector<1x1x16x128xf32> to vector<1x16x128xf32>
    %56 = vector.shape_cast %53 : vector<1x16x128xf32> to vector<1x1x16x128xf32>
    tpu.vector_store %arg6[%c0_26, %c0_27, %c0_28, %c0_29], %56 {strides = array<i32>} : memref<1x8x16x128xf32, #tpu.memory_space<vmem>>, vector<1x1x16x128xf32>,
    %57 = vector.extract_strided_slice %33 {offsets = [7, 0, 0], sizes = [1, 16, 128], strides = [1, 1, 1]} : vector<8x16x128xf32> to vector<1x16x128xf32>
    %58 = vector.extract_strided_slice %1 {offsets = [6, 0, 0], sizes = [1, 16, 128], strides = [1, 1, 1]} : vector<8x16x128xf32> to vector<1x16x128xf32>
    %59 = arith.addf %58, %37 : vector<1x16x128xf32>
    %cst_30 = arith.constant 5.000000e-02 : f32
    %60 = vector.broadcast %cst_30 : f32 to vector<1x16x128xf32>
    %61 = arith.mulf %60, %59 : vector<1x16x128xf32>
    %62 = arith.addf %57, %61 : vector<1x16x128xf32>
    %c0_31 = arith.constant 0 : index
    %c7 = arith.constant 7 : index
    %c0_32 = arith.constant 0 : index
    %c0_33 = arith.constant 0 : index
    %63 = vector.load %arg6[%c0_31, %c7, %c0_32, %c0_33] : memref<1x8x16x128xf32, #tpu.memory_space<vmem>>, vector<1x1x16x128xf32>
    %64 = vector.shape_cast %63 : vector<1x1x16x128xf32> to vector<1x16x128xf32>
    %65 = vector.shape_cast %62 : vector<1x16x128xf32> to vector<1x1x16x128xf32>
    tpu.vector_store %arg6[%c0_31, %c7, %c0_32, %c0_33], %65 {strides = array<i32>} : memref<1x8x16x128xf32, #tpu.memory_space<vmem>>, vector<1x1x16x128xf32>,
    return
  }
  func.func @transform_0(%arg0: i32, %arg1: i32) -> (i32, i32, i32, i32) {
    %c0_i32 = arith.constant 0 : i32
    %c0_i32_0 = arith.constant 0 : i32
    %c0_i32_1 = arith.constant 0 : i32
    return %arg0, %arg1, %c0_i32, %c0_i32_0 : i32, i32, i32, i32
  }
  func.func @transform_1(%arg0: i32, %arg1: i32) -> (i32, i32, i32, i32) {
    %c8_i32 = arith.constant 8 : i32
    %0 = arith.muli %arg1, %c8_i32 : i32
    %c1_i32 = arith.constant 1 : i32
    %1 = arith.subi %0, %c1_i32 : i32
    %c0_i32 = arith.constant 0 : i32
    %2 = arith.maxsi %1, %c0_i32 : i32
    %c0_i32_0 = arith.constant 0 : i32
    %c0_i32_1 = arith.constant 0 : i32
    %c0_i32_2 = arith.constant 0 : i32
    return %arg0, %2, %c0_i32_0, %c0_i32_1 : i32, i32, i32, i32
  }
  func.func @transform_2(%arg0: i32, %arg1: i32) -> (i32, i32, i32, i32) {
    %c8_i32 = arith.constant 8 : i32
    %0 = arith.muli %arg1, %c8_i32 : i32
    %c8_i32_0 = arith.constant 8 : i32
    %1 = arith.addi %0, %c8_i32_0 : i32
    %c7_i32 = arith.constant 7 : i32
    %2 = arith.minsi %1, %c7_i32 : i32
    %c0_i32 = arith.constant 0 : i32
    %c0_i32_1 = arith.constant 0 : i32
    %c0_i32_2 = arith.constant 0 : i32
    return %arg0, %2, %c0_i32, %c0_i32_1 : i32, i32, i32, i32
  }
  func.func @transform_3(%arg0: i32, %arg1: i32) -> (i32, i32, i32, i32) {
    %c0_i32 = arith.constant 0 : i32
    %c0_i32_0 = arith.constant 0 : i32
    %c0_i32_1 = arith.constant 0 : i32
    return %arg0, %arg1, %c0_i32, %c0_i32_0 : i32, i32, i32, i32
  }
  func.func @transform_4(%arg0: i32, %arg1: i32) -> (i32, i32, i32, i32) {
    %c0_i32 = arith.constant 0 : i32
    %c0_i32_0 = arith.constant 0 : i32
    %c0_i32_1 = arith.constant 0 : i32
    return %arg0, %arg1, %c0_i32, %c0_i32_0 : i32, i32, i32, i32
  }
}

</mosaic_0001>

<llo_original>
// kernel: tpu_custom_call.1
$region0: #{tpu_custom_call.1}
  #allocation0 [shape = 'u32[]', space=smem, size = 0x4, offset = 0x4, fixed_abs, tag = 'smem constant byte address 0x4 - core index']
  #allocation1 [shape = 'u32[144,128]{1,0:T(1,128)}', space=vmem, size = 0x12000, scoped, tag = 'internal scratch']
  %s0 = inlined_call_operand.hbm [shape: f32[2,8,16,128], index: 0, kind: input, shape index: {}]
  %s1 = inlined_call_operand.hbm [shape: f32[2,8,16,128], index: 1, kind: input, shape index: {}]
  %s2 = inlined_call_operand.hbm [shape: f32[2,8,16,128], index: 2, kind: input, shape index: {}]
  %s3 = inlined_call_operand.hbm [shape: f32[2,8,16,128], index: 3, kind: input, shape index: {}]
  %s4 = inlined_call_operand.hbm [shape: f32[2,8,16,128], index: 4, kind: output, shape index: {}]
  %s5 = sld [smem:[#allocation0]]
  $region65: #{tpu_custom_call.1} parent=0
    _
  %s7 = ssub.s32 1, %s5
  %s8 = scalar_select 0, %s7, %s5
  $region1: #{tpu_custom_call.1} parent=0
    #allocation2 [shape = 'u8[131072]{0}', space=vmem, size = 0x20000, scoped, tag = 'input window, operand 0']
    #allocation3 [shape = 's32[2]{0}', space=sflag, size = 0x8, scoped, tag = 'scoped memory for tpu_custom_call.1']
    #allocation4 [shape = 's32[2]{0}', space=sflag, size = 0x8, scoped, tag = 'scoped memory for tpu_custom_call.1']
    #allocation5 [shape = 'u8[16384]{0}', space=vmem, size = 0x4000, scoped, tag = 'input window, operand 1']
    #allocation6 [shape = 's32[2]{0}', space=sflag, size = 0x8, scoped, tag = 'scoped memory for tpu_custom_call.1']
    #allocation7 [shape = 'u8[16384]{0}', space=vmem, size = 0x4000, scoped, tag = 'input window, operand 2']
    #allocation8 [shape = 'u8[131072]{0}', space=vmem, size = 0x20000, scoped, tag = 'input window, operand 3']
    #allocation9 [shape = 's32[2]{0}', space=sflag, size = 0x8, scoped, tag = 'scoped memory for tpu_custom_call.1']
    #allocation10 [shape = 'u8[131072]{0}', space=vmem, size = 0x20000, scoped, tag = 'output window, operand 0']
    %9 = vsyncpa [#allocation3], 0
    %s10 = scalar_lea.sflag [#allocation3], 1
    %11 = vsyncpa %s10, 0
    %12 = vsyncpa [#allocation6], 0
    %s13 = scalar_lea.sflag [#allocation6], 1
    %14 = vsyncpa %s13, 0
    %15 = vsyncpa [#allocation9], 0
    %s16 = scalar_lea.sflag [#allocation9], 1
    %17 = vsyncpa %s16, 0
    %18 = vsyncpa [#allocation4], 0
    %s19 = scalar_lea.sflag [#allocation4], 1
    %20 = vsyncpa %s19, 0
    loop: start=0, step=1, limit=4
    $region2: #{tpu_custom_call.1} parent=1 // loop_pre_header
      _
    $region3: #{tpu_custom_call.1} parent=1 // loop_header
      %s22 = sphi 0, %s26
      %p23 = scmp.ge.s32.totalorder %s22, 4
      %s29 = sphi 0, %s41
      %s30 = sphi 0, %s37
      %s31 = sphi 0, %s29
      %s32 = sphi 0, %s30
      %s33 = sphi 0, %s31
      %s34 = sphi 0, %s32
      %s46 = sphi 0, %s48
      %s49 = sphi 0, %s46
      %s50 = sphi 0, %s49
      %s66 = sphi 0, %s50
      %s82 = sphi 0, %s84
      %s85 = sphi 0, %s82
      %s86 = sphi 0, %s85
      %s102 = sphi 0, %s86
      %s118 = sphi 0, %s120
      %s121 = sphi 0, %s118
      %s122 = sphi 0, %s121
      %s138 = sphi 0, %s122
      %s146 = sphi 0, %s148
      %s149 = sphi 0, %s146
      %s150 = sphi 0, %s149
      %s166 = sphi 0, %s150
      %s174 = sphi 0, %s176
      %s177 = sphi 0, %s174
      %s178 = sphi 0, %s177
      %s194 = sphi 0, %s178
    $region4: #{tpu_custom_call.1} parent=1 // loop_header_branch
      %25 = sbr.rel (%p23) target = $region8
    $region5: #{tpu_custom_call.1} parent=1 // loop_body
      %s27 = ssub.s32 %s22, 1
      %s28 = ssub.s32 %s22, 2
      %s35 = sadd.s32 1, %s30
      %p36 = scmp.ge.s32.totalorder %s35, 1
      %s37 = scalar_select %p36, 0, %s35
      %s38 = sadd.s32 1, %s29
      %s39 = scalar_select %p36, %s38, %s29
      %p40 = scmp.ge.s32.totalorder %s39, 2
      %s41 = scalar_select %p40, 0, %s39
      %s42 = ssub.s32 %s29, %s41
      %s43 = ssub.s32 %s30, %s37
      %s44 = sor.u32 %s42, %s43
      %p45 = scmp.eq.s32.totalorder %s44, 0
      %s47 = sadd.s32 %s46, 1
      %s48 = scalar_select %p45, %s46, %s47
      %p51 = pneg %p45
      %p52 = scmp.eq.s32.totalorder %s22, 1
      %p53 = por %p51, %p52
      %p54 = scmp.ne.s32.totalorder %s46, %s49
      %p55 = scmp.eq.s32.totalorder %s22, 0
      %p56 = por %p54, %p55
      %p57 = scmp.ne.s32.totalorder %s46, %s49
      %p58 = scmp.eq.s32.totalorder %s27, 1
      %p59 = por %p57, %p58
      %p60 = scmp.ne.s32.totalorder %s49, %s50
      %p61 = scmp.eq.s32.totalorder %s27, 0
      %p62 = por %p60, %p61
      %p63 = scmp.ne.s32.totalorder %s49, %s50
      %p64 = scmp.eq.s32.totalorder %s28, 1
      %p65 = por %p63, %p64
      %p67 = scmp.ne.s32.totalorder %s50, %s66
      %p68 = scmp.eq.s32.totalorder %s28, 0
      %p69 = por %p67, %p68
      %s70 = smul.u32 %s30, 8
      %s71 = ssub.s32 %s70, 1
      %p72 = scmp.gt.s32.totalorder %s71, 0
      %s73 = scalar_select %p72, %s71, 0
      %s74 = smul.u32 %s37, 8
      %s75 = ssub.s32 %s74, 1
      %p76 = scmp.gt.s32.totalorder %s75, 0
      %s77 = scalar_select %p76, %s75, 0
      %s78 = ssub.s32 %s29, %s41
      %s79 = ssub.s32 %s73, %s77
      %s80 = sor.u32 %s78, %s79
      %p81 = scmp.eq.s32.totalorder %s80, 0
      %s83 = sadd.s32 %s82, 1
      %s84 = scalar_select %p81, %s82, %s83
      %p87 = pneg %p81
      %p88 = scmp.eq.s32.totalorder %s22, 1
      %p89 = por %p87, %p88
      %p90 = scmp.ne.s32.totalorder %s82, %s85
      %p91 = scmp.eq.s32.totalorder %s22, 0
      %p92 = por %p90, %p91
      %p93 = scmp.ne.s32.totalorder %s82, %s85
      %p94 = scmp.eq.s32.totalorder %s27, 1
      %p95 = por %p93, %p94
      %p96 = scmp.ne.s32.totalorder %s85, %s86
      %p97 = scmp.eq.s32.totalorder %s27, 0
      %p98 = por %p96, %p97
      %p99 = scmp.ne.s32.totalorder %s85, %s86
      %p100 = scmp.eq.s32.totalorder %s28, 1
      %p101 = por %p99, %p100
      %p103 = scmp.ne.s32.totalorder %s86, %s102
      %p104 = scmp.eq.s32.totalorder %s28, 0
      %p105 = por %p103, %p104
      %s106 = smul.u32 %s30, 8
      %s107 = sadd.s32 %s106, 8
      %p108 = scmp.lt.s32.totalorder %s107, 7
      %s109 = scalar_select %p108, %s107, 7
      %s110 = smul.u32 %s37, 8
      %s111 = sadd.s32 %s110, 8
      %p112 = scmp.lt.s32.totalorder %s111, 7
      %s113 = scalar_select %p112, %s111, 7
      %s114 = ssub.s32 %s29, %s41
      %s115 = ssub.s32 %s109, %s113
      %s116 = sor.u32 %s114, %s115
      %p117 = scmp.eq.s32.totalorder %s116, 0
      %s119 = sadd.s32 %s118, 1
      %s120 = scalar_select %p117, %s118, %s119
      %p123 = pneg %p117
      %p124 = scmp.eq.s32.totalorder %s22, 1
      %p125 = por %p123, %p124
      %p126 = scmp.ne.s32.totalorder %s118, %s121
      %p127 = scmp.eq.s32.totalorder %s22, 0
      %p128 = por %p126, %p127
      %p129 = scmp.ne.s32.totalorder %s118, %s121
      %p130 = scmp.eq.s32.totalorder %s27, 1
      %p131 = por %p129, %p130
      %p132 = scmp.ne.s32.totalorder %s121, %s122
      %p133 = scmp.eq.s32.totalorder %s27, 0
      %p134 = por %p132, %p133
      %p135 = scmp.ne.s32.totalorder %s121, %s122
      %p136 = scmp.eq.s32.totalorder %s28, 1
      %p137 = por %p135, %p136
      %p139 = scmp.ne.s32.totalorder %s122, %s138
      %p140 = scmp.eq.s32.totalorder %s28, 0
      %p141 = por %p139, %p140
      %s142 = ssub.s32 %s29, %s41
      %s143 = ssub.s32 %s30, %s37
      %s144 = sor.u32 %s142, %s143
      %p145 = scmp.eq.s32.totalorder %s144, 0
      %s147 = sadd.s32 %s146, 1
      %s148 = scalar_select %p145, %s146, %s147
      %p151 = pneg %p145
      %p152 = scmp.eq.s32.totalorder %s22, 1
      %p153 = por %p151, %p152
      %p154 = scmp.ne.s32.totalorder %s146, %s149
      %p155 = scmp.eq.s32.totalorder %s22, 0
      %p156 = por %p154, %p155
      %p157 = scmp.ne.s32.totalorder %s146, %s149
      %p158 = scmp.eq.s32.totalorder %s27, 1
      %p159 = por %p157, %p158
      %p160 = scmp.ne.s32.totalorder %s149, %s150
      %p161 = scmp.eq.s32.totalorder %s27, 0
      %p162 = por %p160, %p161
      %p163 = scmp.ne.s32.totalorder %s149, %s150
      %p164 = scmp.eq.s32.totalorder %s28, 1
      %p165 = por %p163, %p164
      %p167 = scmp.ne.s32.totalorder %s150, %s166
      %p168 = scmp.eq.s32.totalorder %s28, 0
      %p169 = por %p167, %p168
      %s170 = ssub.s32 %s29, %s41
      %s171 = ssub.s32 %s30, %s37
      %s172 = sor.u32 %s170, %s171
      %p173 = scmp.eq.s32.totalorder %s172, 0
      %s175 = sadd.s32 %s174, 1
      %s176 = scalar_select %p173, %s174, %s175
      %p179 = pneg %p173
      %p180 = scmp.eq.s32.totalorder %s22, 1
      %p181 = por %p179, %p180
      %p182 = scmp.ne.s32.totalorder %s174, %s177
      %p183 = scmp.eq.s32.totalorder %s22, 0
      %p184 = por %p182, %p183
      %p185 = scmp.ne.s32.totalorder %s174, %s177
      %p186 = scmp.eq.s32.totalorder %s27, 1
      %p187 = por %p185, %p186
      %p188 = scmp.ne.s32.totalorder %s177, %s178
      %p189 = scmp.eq.s32.totalorder %s27, 0
      %p190 = por %p188, %p189
      %p191 = scmp.ne.s32.totalorder %s177, %s178
      %p192 = scmp.eq.s32.totalorder %s28, 1
      %p193 = por %p191, %p192
      %p195 = scmp.ne.s32.totalorder %s178, %s194
      %p196 = scmp.eq.s32.totalorder %s28, 0
      %p197 = por %p195, %p196
      %p198 = scmp.le.s32.totalorder 1, %s22
      %p199 = scmp.lt.s32.totalorder %s22, 3
      %p200 = pnand %p198, %p199
      %p201 = pneg %p200
      // Predicated region
      $region9: #{tpu_custom_call.1} parent=5 // pred_check
        _
      $region10: #{tpu_custom_call.1} parent=5 // pred_check_branch
        %203 = sbr.rel (%p200) target = $region12
      $region11: #{tpu_custom_call.1} parent=5 // pred_region
        %s204 = ssub.s32 %s22, 1
      $region12: #{tpu_custom_call.1} parent=5 // pred_fallthru
        _
      %p205 = scmp.lt.s32.totalorder %s22, 2
      // Predicated region
      $region13: #{tpu_custom_call.1} parent=5 // pred_check
        %p206 = pneg %p205
      $region14: #{tpu_custom_call.1} parent=5 // pred_check_branch
        %208 = sbr.rel (%p206) target = $region16
      $region15: #{tpu_custom_call.1} parent=5 // pred_region
        // Predicated region
        $region17: #{tpu_custom_call.1} parent=15 // pred_check
          %p209 = pneg %p56
        $region18: #{tpu_custom_call.1} parent=15 // pred_check_branch
          %211 = sbr.rel (%p209) target = $region20
        $region19: #{tpu_custom_call.1} parent=15 // pred_region
          %s212 = sand.u32 %s46, 1
          %s213 = scalar_lea.sflag [#allocation3], %s212
          %s214 = sand.u32 %s46, 1
          %s215 = smul.addr %s214, 128
          %s216 = scalar_lea.vmem [#allocation2], %s215
          %s217 = smul.u32 8, %s30
          %s219 = ssub.s32 2048, 2048
          %220 = vsyncadd %s213, %s219
          %s221 = smul.addr %s217, 2
          %s222 = smul.addr %s29, 16
          %s223 = sadd.s32 %s221, %s222
          %s224 = smul.addr %s223, 128
          %s225 = scalar_lea.hbm %s0, %s224
          %s226 = sshll.u32 %s216, 4
          %s227 = int_to_ptr.vmem [resolvable:$true] %s226
          %232 = dma.hbm_to_vmem [thread:$0]  %s225, 2048, %s227, %s213, 128, 128, 8
        $region20: #{tpu_custom_call.1} parent=15 // pred_fallthru
          _
        // Predicated region
        $region21: #{tpu_custom_call.1} parent=15 // pred_check
          %p233 = pneg %p92
        $region22: #{tpu_custom_call.1} parent=15 // pred_check_branch
          %235 = sbr.rel (%p233) target = $region24
        $region23: #{tpu_custom_call.1} parent=15 // pred_region
          %s236 = sand.u32 %s22, 1
          %s237 = scalar_lea.sflag [#allocation6], %s236
          %s238 = sand.u32 %s82, 1
          %s239 = smul.addr %s238, 16
          %s240 = scalar_lea.vmem [#allocation5], %s239
          %s241 = smul.u32 %s30, 8
          %s242 = ssub.s32 %s241, 1
          %p243 = scmp.gt.s32.totalorder %s242, 0
          %s244 = scalar_select %p243, %s242, 0
          %s246 = ssub.s32 256, 256
          %247 = vsyncadd %s237, %s246
          %s248 = smul.addr %s244, 2
          %s249 = smul.addr %s29, 16
          %s250 = sadd.s32 %s248, %s249
          %s251 = smul.addr %s250, 128
          %s252 = scalar_lea.hbm %s1, %s251
          %s253 = sshll.u32 %s240, 4
          %s254 = int_to_ptr.vmem [resolvable:$true] %s253
          %259 = dma.hbm_to_vmem [thread:$0]  %s252, 256, %s254, %s237, 128, 128, 8
        $region24: #{tpu_custom_call.1} parent=15 // pred_fallthru
          _
        // Predicated region
        $region25: #{tpu_custom_call.1} parent=15 // pred_check
          %p260 = pneg %p128
        $region26: #{tpu_custom_call.1} parent=15 // pred_check_branch
          %262 = sbr.rel (%p260) target = $region28
        $region27: #{tpu_custom_call.1} parent=15 // pred_region
          %s263 = sand.u32 %s22, 1
          %s264 = scalar_lea.sflag [#allocation6], %s263
          %s265 = sand.u32 %s118, 1
          %s266 = smul.addr %s265, 16
          %s267 = scalar_lea.vmem [#allocation7], %s266
          %s268 = smul.u32 %s30, 8
          %s269 = sadd.s32 %s268, 8
          %p270 = scmp.lt.s32.totalorder %s269, 7
          %s271 = scalar_select %p270, %s269, 7
          %s273 = ssub.s32 256, 256
          %274 = vsyncadd %s264, %s273
          %s275 = smul.addr %s271, 2
          %s276 = smul.addr %s29, 16
          %s277 = sadd.s32 %s275, %s276
          %s278 = smul.addr %s277, 128
          %s279 = scalar_lea.hbm %s2, %s278
          %s280 = sshll.u32 %s267, 4
          %s281 = int_to_ptr.vmem [resolvable:$true] %s280
          %286 = dma.hbm_to_vmem [thread:$0]  %s279, 256, %s281, %s264, 128, 128, 8
        $region28: #{tpu_custom_call.1} parent=15 // pred_fallthru
          _
        // Predicated region
        $region29: #{tpu_custom_call.1} parent=15 // pred_check
          %p287 = pneg %p156
        $region30: #{tpu_custom_call.1} parent=15 // pred_check_branch
          %289 = sbr.rel (%p287) target = $region32
        $region31: #{tpu_custom_call.1} parent=15 // pred_region
          %s290 = sand.u32 %s146, 1
          %s291 = scalar_lea.sflag [#allocation9], %s290
          %s292 = sand.u32 %s146, 1
          %s293 = smul.addr %s292, 128
          %s294 = scalar_lea.vmem [#allocation8], %s293
          %s295 = smul.u32 8, %s30
          %s297 = ssub.s32 2048, 2048
          %298 = vsyncadd %s291, %s297
          %s299 = smul.addr %s295, 2
          %s300 = smul.addr %s29, 16
          %s301 = sadd.s32 %s299, %s300
          %s302 = smul.addr %s301, 128
          %s303 = scalar_lea.hbm %s3, %s302
          %s304 = sshll.u32 %s294, 4
          %s305 = int_to_ptr.vmem [resolvable:$true] %s304
          %310 = dma.hbm_to_vmem [thread:$0]  %s303, 2048, %s305, %s291, 128, 128, 8
        $region32: #{tpu_custom_call.1} parent=15 // pred_fallthru
          _
      $region16: #{tpu_custom_call.1} parent=5 // pred_fallthru
        _
      %p311 = scmp.le.s32.totalorder 1, %s22
      %p312 = scmp.lt.s32.totalorder %s22, 3
      %p313 = pnand %p311, %p312
      %p314 = pneg %p313
      // Predicated region
      $region33: #{tpu_custom_call.1} parent=5 // pred_check
        _
      $region34: #{tpu_custom_call.1} parent=5 // pred_check_branch
        %316 = sbr.rel (%p313) target = $region36
      $region35: #{tpu_custom_call.1} parent=5 // pred_region
        %s317 = ssub.s32 %s22, 1
        %s318 = sand.u32 %s49, 1
        %s319 = scalar_lea.sflag [#allocation3], %s318
        %s320 = sand.u32 %s49, 1
        %s321 = smul.addr %s320, 128
        %s322 = scalar_lea.vmem [#allocation2], %s321
        // Predicated region
        $region37: #{tpu_custom_call.1} parent=35 // pred_check
          %p323 = pneg %p62
        $region38: #{tpu_custom_call.1} parent=35 // pred_check_branch
          %325 = sbr.rel (%p323) target = $region40
        $region39: #{tpu_custom_call.1} parent=35 // pred_region
          %326 = dma.done %s319, 2048
        $region40: #{tpu_custom_call.1} parent=35 // pred_fallthru
          _
        %s327 = sand.u32 %s27, 1
        %s328 = scalar_lea.sflag [#allocation6], %s327
        %s329 = sand.u32 %s85, 1
        %s330 = smul.addr %s329, 16
        %s331 = scalar_lea.vmem [#allocation5], %s330
        // Predicated region
        $region41: #{tpu_custom_call.1} parent=35 // pred_check
          %p332 = pneg %p98
        $region42: #{tpu_custom_call.1} parent=35 // pred_check_branch
          %334 = sbr.rel (%p332) target = $region44
        $region43: #{tpu_custom_call.1} parent=35 // pred_region
          %335 = dma.done %s328, 256
        $region44: #{tpu_custom_call.1} parent=35 // pred_fallthru
          _
        %s336 = sand.u32 %s27, 1
        %s337 = scalar_lea.sflag [#allocation6], %s336
        %s338 = sand.u32 %s121, 1
        %s339 = smul.addr %s338, 16
        %s340 = scalar_lea.vmem [#allocation7], %s339
        // Predicated region
        $region45: #{tpu_custom_call.1} parent=35 // pred_check
          %p341 = pneg %p134
        $region46: #{tpu_custom_call.1} parent=35 // pred_check_branch
          %343 = sbr.rel (%p341) target = $region48
        $region47: #{tpu_custom_call.1} parent=35 // pred_region
          %344 = dma.done %s337, 256
        $region48: #{tpu_custom_call.1} parent=35 // pred_fallthru
          _
        %s345 = sand.u32 %s149, 1
        %s346 = scalar_lea.sflag [#allocation9], %s345
        %s347 = sand.u32 %s149, 1
        %s348 = smul.addr %s347, 128
        %s349 = scalar_lea.vmem [#allocation8], %s348
        // Predicated region
        $region49: #{tpu_custom_call.1} parent=35 // pred_check
          %p350 = pneg %p162
        $region50: #{tpu_custom_call.1} parent=35 // pred_check_branch
          %352 = sbr.rel (%p350) target = $region52
        $region51: #{tpu_custom_call.1} parent=35 // pred_region
          %353 = dma.done %s346, 2048
        $region52: #{tpu_custom_call.1} parent=35 // pred_fallthru
          _
        %s354 = sand.u32 %s49, 1
        %s355 = scalar_lea.sflag [#allocation3], %s354
        %s356 = sand.u32 %s49, 1
        %s357 = smul.addr %s356, 128
        %s358 = scalar_lea.vmem [#allocation2], %s357
        %p359 = pneg %p62
        %p360 = pneg %p59
        %s361 = sand.u32 %s27, 1
        %s362 = scalar_lea.sflag [#allocation6], %s361
        %s363 = sand.u32 %s85, 1
        %s364 = smul.addr %s363, 16
        %s365 = scalar_lea.vmem [#allocation5], %s364
        %p366 = pneg %p98
        %p367 = pneg %p95
        %s368 = sand.u32 %s27, 1
        %s369 = scalar_lea.sflag [#allocation6], %s368
        %s370 = sand.u32 %s121, 1
        %s371 = smul.addr %s370, 16
        %s372 = scalar_lea.vmem [#allocation7], %s371
        %p373 = pneg %p134
        %p374 = pneg %p131
        %s375 = sand.u32 %s149, 1
        %s376 = scalar_lea.sflag [#allocation9], %s375
        %s377 = sand.u32 %s149, 1
        %s378 = smul.addr %s377, 128
        %s379 = scalar_lea.vmem [#allocation8], %s378
        %p380 = pneg %p162
        %p381 = pneg %p159
        %p382 = pneg %p190
        %p383 = pneg %p187
        %s384 = sand.u32 %s177, 1
        %s385 = scalar_lea.sflag [#allocation4], %s384
        %s386 = sand.u32 %s177, 1
        %s387 = smul.addr %s386, 128
        %s388 = scalar_lea.vmem [#allocation10], %s387
        %s389 = smul.u32 8, %s32
        %s390 = smul.u32 %s32, 8
        %s391 = ssub.s32 %s390, 1
        %p392 = scmp.gt.s32.totalorder %s391, 0
        %s393 = scalar_select %p392, %s391, 0
        %s394 = smul.u32 %s32, 8
        %s395 = sadd.s32 %s394, 8
        %p396 = scmp.lt.s32.totalorder %s395, 7
        %s397 = scalar_select %p396, %s395, 7
        %s398 = smul.u32 8, %s32
        %s399 = smul.u32 8, %s32
        %v400 = vld [vmem:[%s322] sm:$0xff]
        %v401 = vld [vmem:[%s322 + $0x8] sm:$0xff]
        %v402 = vld [vmem:[%s322 + $0x10] sm:$0xff]
        %v403 = vld [vmem:[%s322 + $0x18] sm:$0xff]
        %v404 = vld [vmem:[%s322 + $0x20] sm:$0xff]
        %v405 = vld [vmem:[%s322 + $0x28] sm:$0xff]
        %v406 = vld [vmem:[%s322 + $0x30] sm:$0xff]
        %v407 = vld [vmem:[%s322 + $0x38] sm:$0xff]
        %v408 = vld [vmem:[%s322 + $0x40] sm:$0xff]
        %v409 = vld [vmem:[%s322 + $0x48] sm:$0xff]
        %v410 = vld [vmem:[%s322 + $0x50] sm:$0xff]
        %v411 = vld [vmem:[%s322 + $0x58] sm:$0xff]
        %v412 = vld [vmem:[%s322 + $0x60] sm:$0xff]
        %v413 = vld [vmem:[%s322 + $0x68] sm:$0xff]
        %v414 = vld [vmem:[%s322 + $0x70] sm:$0xff]
        %v415 = vld [vmem:[%s322 + $0x78] sm:$0xff]
        %v416 = vld [vmem:[%s349] sm:$0xff]
        %v417 = vld [vmem:[%s349 + $0x8] sm:$0xff]
        %v418 = vld [vmem:[%s349 + $0x10] sm:$0xff]
        %v419 = vld [vmem:[%s349 + $0x18] sm:$0xff]
        %v420 = vld [vmem:[%s349 + $0x20] sm:$0xff]
        %v421 = vld [vmem:[%s349 + $0x28] sm:$0xff]
        %v422 = vld [vmem:[%s349 + $0x30] sm:$0xff]
        %v423 = vld [vmem:[%s349 + $0x38] sm:$0xff]
        %v424 = vld [vmem:[%s349 + $0x40] sm:$0xff]
        %v425 = vld [vmem:[%s349 + $0x48] sm:$0xff]
        %v426 = vld [vmem:[%s349 + $0x50] sm:$0xff]
        %v427 = vld [vmem:[%s349 + $0x58] sm:$0xff]
        %v428 = vld [vmem:[%s349 + $0x60] sm:$0xff]
        %v429 = vld [vmem:[%s349 + $0x68] sm:$0xff]
        %v430 = vld [vmem:[%s349 + $0x70] sm:$0xff]
        %v431 = vld [vmem:[%s349 + $0x78] sm:$0xff]
        %v432 = vsub.f32 1.0, %v400
        %v433 = vsub.f32 1.0, %v401
        %v434 = vsub.f32 1.0, %v402
        %v435 = vsub.f32 1.0, %v403
        %v436 = vsub.f32 1.0, %v404
        %v437 = vsub.f32 1.0, %v405
        %v438 = vsub.f32 1.0, %v406
        %v439 = vsub.f32 1.0, %v407
        %v440 = vsub.f32 1.0, %v408
        %v441 = vsub.f32 1.0, %v409
        %v442 = vsub.f32 1.0, %v410
        %v443 = vsub.f32 1.0, %v411
        %v444 = vsub.f32 1.0, %v412
        %v445 = vsub.f32 1.0, %v413
        %v446 = vsub.f32 1.0, %v414
        %v447 = vsub.f32 1.0, %v415
        %v448 = vmul.f32 %v416, %v432
        %v449 = vmul.f32 %v417, %v433
        %v450 = vmul.f32 %v418, %v434
        %v451 = vmul.f32 %v419, %v435
        %v452 = vmul.f32 %v420, %v436
        %v453 = vmul.f32 %v421, %v437
        %v454 = vmul.f32 %v422, %v438
        %v455 = vmul.f32 %v423, %v439
        %v456 = vmul.f32 %v424, %v440
        %v457 = vmul.f32 %v425, %v441
        %v458 = vmul.f32 %v426, %v442
        %v459 = vmul.f32 %v427, %v443
        %v460 = vmul.f32 %v428, %v444
        %v461 = vmul.f32 %v429, %v445
        %v462 = vmul.f32 %v430, %v446
        %v463 = vmul.f32 %v431, %v447
        %v464 = vlaneseq
        %v465 = vshrl.u32 %v464, 7
        %v466 = vadd.s32 %v465, 8
        %v467 = vrot.slane %v400, 1
        %v468 = vrot.slane %v402, 1
        %v469 = vrot.slane %v404, 1
        %v470 = vrot.slane %v406, 1
        %v471 = vrot.slane %v408, 1
        %v472 = vrot.slane %v410, 1
        %v473 = vrot.slane %v412, 1
        %v474 = vrot.slane %v414, 1
        %v475 = vrot.slane %v401, 1
        %v476 = vrot.slane %v403, 1
        %v477 = vrot.slane %v405, 1
        %v478 = vrot.slane %v407, 1
        %v479 = vrot.slane %v409, 1
        %v480 = vrot.slane %v411, 1
        %v481 = vrot.slane %v413, 1
        %v482 = vrot.slane %v415, 1
        %vm483 = vcmp.lt.s32.totalorder %v465, 7
        %v484 = vsel %vm483, %v467, %v475
        %v485 = vsel %vm483, %v468, %v476
        %v486 = vsel %vm483, %v469, %v477
        %v487 = vsel %vm483, %v470, %v478
        %v488 = vsel %vm483, %v471, %v479
        %v489 = vsel %vm483, %v472, %v480
        %v490 = vsel %vm483, %v473, %v481
        %v491 = vsel %vm483, %v474, %v482
        %v492 = vsel %vm483, %v475, %v467
        %v493 = vsel %vm483, %v476, %v468
        %v494 = vsel %vm483, %v477, %v469
        %v495 = vsel %vm483, %v478, %v470
        %v496 = vsel %vm483, %v479, %v471
        %v497 = vsel %vm483, %v480, %v472
        %v498 = vsel %vm483, %v481, %v473
        %v499 = vsel %vm483, %v482, %v474
        %v500 = vrot.slane %v400, 7
        %v501 = vrot.slane %v402, 7
        %v502 = vrot.slane %v404, 7
        %v503 = vrot.slane %v406, 7
        %v504 = vrot.slane %v408, 7
        %v505 = vrot.slane %v410, 7
        %v506 = vrot.slane %v412, 7
        %v507 = vrot.slane %v414, 7
        %v508 = vrot.slane %v401, 7
        %v509 = vrot.slane %v403, 7
        %v510 = vrot.slane %v405, 7
        %v511 = vrot.slane %v407, 7
        %v512 = vrot.slane %v409, 7
        %v513 = vrot.slane %v411, 7
        %v514 = vrot.slane %v413, 7
        %v515 = vrot.slane %v415, 7
        %vm516 = vcmp.lt.s32.totalorder %v465, 1
        %v517 = vsel %vm516, %v500, %v508
        %v518 = vsel %vm516, %v501, %v509
        %v519 = vsel %vm516, %v502, %v510
        %v520 = vsel %vm516, %v503, %v511
        %v521 = vsel %vm516, %v504, %v512
        %v522 = vsel %vm516, %v505, %v513
        %v523 = vsel %vm516, %v506, %v514
        %v524 = vsel %vm516, %v507, %v515
        %v525 = vsel %vm516, %v508, %v500
        %v526 = vsel %vm516, %v509, %v501
        %v527 = vsel %vm516, %v510, %v502
        %v528 = vsel %vm516, %v511, %v503
        %v529 = vsel %vm516, %v512, %v504
        %v530 = vsel %vm516, %v513, %v505
        %v531 = vsel %vm516, %v514, %v506
        %v532 = vsel %vm516, %v515, %v507
        %vm533 = vcmp.eq.s32.totalorder %v465, 15
        %vm534 = vcmp.eq.s32.totalorder %v466, 15
        %v535 = vsel %vm533, %v400, %v484
        %v536 = vsel %vm534, %v401, %v492
        %v537 = vsel %vm533, %v402, %v485
        %v538 = vsel %vm534, %v403, %v493
        %v539 = vsel %vm533, %v404, %v486
        %v540 = vsel %vm534, %v405, %v494
        %v541 = vsel %vm533, %v406, %v487
        %v542 = vsel %vm534, %v407, %v495
        %v543 = vsel %vm533, %v408, %v488
        %v544 = vsel %vm534, %v409, %v496
        %v545 = vsel %vm533, %v410, %v489
        %v546 = vsel %vm534, %v411, %v497
        %v547 = vsel %vm533, %v412, %v490
        %v548 = vsel %vm534, %v413, %v498
        %v549 = vsel %vm533, %v414, %v491
        %v550 = vsel %vm534, %v415, %v499
        %vm551 = vcmp.eq.s32.totalorder %v465, 0
        %vm552 = vcmp.eq.s32.totalorder %v466, 0
        %v553 = vsel %vm551, %v400, %v525
        %v554 = vsel %vm552, %v401, %v517
        %v555 = vsel %vm551, %v402, %v526
        %v556 = vsel %vm552, %v403, %v518
        %v557 = vsel %vm551, %v404, %v527
        %v558 = vsel %vm552, %v405, %v519
        %v559 = vsel %vm551, %v406, %v528
        %v560 = vsel %vm552, %v407, %v520
        %v561 = vsel %vm551, %v408, %v529
        %v562 = vsel %vm552, %v409, %v521
        %v563 = vsel %vm551, %v410, %v530
        %v564 = vsel %vm552, %v411, %v522
        %v565 = vsel %vm551, %v412, %v531
        %v566 = vsel %vm552, %v413, %v523
        %v567 = vsel %vm551, %v414, %v532
        %v568 = vsel %vm552, %v415, %v524
        %v569 = vadd.f32 %v535, %v553
        %v570 = vadd.f32 %v536, %v554
        %v571 = vadd.f32 %v537, %v555
        %v572 = vadd.f32 %v538, %v556
        %v573 = vadd.f32 %v539, %v557
        %v574 = vadd.f32 %v540, %v558
        %v575 = vadd.f32 %v541, %v559
        %v576 = vadd.f32 %v542, %v560
        %v577 = vadd.f32 %v543, %v561
        %v578 = vadd.f32 %v544, %v562
        %v579 = vadd.f32 %v545, %v563
        %v580 = vadd.f32 %v546, %v564
        %v581 = vadd.f32 %v547, %v565
        %v582 = vadd.f32 %v548, %v566
        %v583 = vadd.f32 %v549, %v567
        %v584 = vadd.f32 %v550, %v568
        %v585 = vlaneseq
        %v586 = vand.u32 %v585, 127
        %587 = vrot.lane.b32.xlu0 %v400, 127
        %v588 = vpop.permute.xlu0 %587
        %589 = vrot.lane.b32.xlu0 %v401, 127
        %v590 = vpop.permute.xlu0 %589
        %591 = vrot.lane.b32.xlu0 %v402, 127
        %v592 = vpop.permute.xlu0 %591
        %593 = vrot.lane.b32.xlu0 %v403, 127
        %v594 = vpop.permute.xlu0 %593
        %595 = vrot.lane.b32.xlu0 %v404, 127
        %v596 = vpop.permute.xlu0 %595
        %597 = vrot.lane.b32.xlu0 %v405, 127
        %v598 = vpop.permute.xlu0 %597
        %599 = vrot.lane.b32.xlu0 %v406, 127
        %v600 = vpop.permute.xlu0 %599
        %601 = vrot.lane.b32.xlu0 %v407, 127
        %v602 = vpop.permute.xlu0 %601
        %603 = vrot.lane.b32.xlu0 %v408, 127
        %v604 = vpop.permute.xlu0 %603
        %605 = vrot.lane.b32.xlu0 %v409, 127
        %v606 = vpop.permute.xlu0 %605
        %607 = vrot.lane.b32.xlu0 %v410, 127
        %v608 = vpop.permute.xlu0 %607
        %609 = vrot.lane.b32.xlu0 %v411, 127
        %v610 = vpop.permute.xlu0 %609
        %611 = vrot.lane.b32.xlu0 %v412, 127
        %v612 = vpop.permute.xlu0 %611
        %613 = vrot.lane.b32.xlu0 %v413, 127
        %v614 = vpop.permute.xlu0 %613
        %615 = vrot.lane.b32.xlu0 %v414, 127
        %v616 = vpop.permute.xlu0 %615
        %617 = vrot.lane.b32.xlu0 %v415, 127
        %v618 = vpop.permute.xlu0 %617
        %619 = vrot.lane.b32.xlu0 %v400, 1
        %v620 = vpop.permute.xlu0 %619
        %621 = vrot.lane.b32.xlu0 %v401, 1
        %v622 = vpop.permute.xlu0 %621
        %623 = vrot.lane.b32.xlu0 %v402, 1
        %v624 = vpop.permute.xlu0 %623
        %625 = vrot.lane.b32.xlu0 %v403, 1
        %v626 = vpop.permute.xlu0 %625
        %627 = vrot.lane.b32.xlu0 %v404, 1
        %v628 = vpop.permute.xlu0 %627
        %629 = vrot.lane.b32.xlu0 %v405, 1
        %v630 = vpop.permute.xlu0 %629
        %631 = vrot.lane.b32.xlu0 %v406, 1
        %v632 = vpop.permute.xlu0 %631
        %633 = vrot.lane.b32.xlu0 %v407, 1
        %v634 = vpop.permute.xlu0 %633
        %635 = vrot.lane.b32.xlu0 %v408, 1
        %v636 = vpop.permute.xlu0 %635
        %637 = vrot.lane.b32.xlu0 %v409, 1
        %v638 = vpop.permute.xlu0 %637
        %639 = vrot.lane.b32.xlu0 %v410, 1
        %v640 = vpop.permute.xlu0 %639
        %641 = vrot.lane.b32.xlu0 %v411, 1
        %v642 = vpop.permute.xlu0 %641
        %643 = vrot.lane.b32.xlu0 %v412, 1
        %v644 = vpop.permute.xlu0 %643
        %645 = vrot.lane.b32.xlu0 %v413, 1
        %v646 = vpop.permute.xlu0 %645
        %647 = vrot.lane.b32.xlu0 %v414, 1
        %v648 = vpop.permute.xlu0 %647
        %649 = vrot.lane.b32.xlu0 %v415, 1
        %v650 = vpop.permute.xlu0 %649
        %vm651 = vcmp.eq.s32.totalorder %v586, 127
        %v652 = vsel %vm651, %v400, %v588
        %v653 = vsel %vm651, %v401, %v590
        %v654 = vsel %vm651, %v402, %v592
        %v655 = vsel %vm651, %v403, %v594
        %v656 = vsel %vm651, %v404, %v596
        %v657 = vsel %vm651, %v405, %v598
        %v658 = vsel %vm651, %v406, %v600
        %v659 = vsel %vm651, %v407, %v602
        %v660 = vsel %vm651, %v408, %v604
        %v661 = vsel %vm651, %v409, %v606
        %v662 = vsel %vm651, %v410, %v608
        %v663 = vsel %vm651, %v411, %v610
        %v664 = vsel %vm651, %v412, %v612
        %v665 = vsel %vm651, %v413, %v614
        %v666 = vsel %vm651, %v414, %v616
        %v667 = vsel %vm651, %v415, %v618
        %vm668 = vcmp.eq.s32.totalorder %v586, 0
        %v669 = vsel %vm668, %v400, %v620
        %v670 = vsel %vm668, %v401, %v622
        %v671 = vsel %vm668, %v402, %v624
        %v672 = vsel %vm668, %v403, %v626
        %v673 = vsel %vm668, %v404, %v628
        %v674 = vsel %vm668, %v405, %v630
        %v675 = vsel %vm668, %v406, %v632
        %v676 = vsel %vm668, %v407, %v634
        %v677 = vsel %vm668, %v408, %v636
        %v678 = vsel %vm668, %v409, %v638
        %v679 = vsel %vm668, %v410, %v640
        %v680 = vsel %vm668, %v411, %v642
        %v681 = vsel %vm668, %v412, %v644
        %v682 = vsel %vm668, %v413, %v646
        %v683 = vsel %vm668, %v414, %v648
        %v684 = vsel %vm668, %v415, %v650
        %v685 = vadd.f32 %v652, %v669
        %v686 = vadd.f32 %v653, %v670
        %v687 = vadd.f32 %v654, %v671
        %v688 = vadd.f32 %v655, %v672
        %v689 = vadd.f32 %v656, %v673
        %v690 = vadd.f32 %v657, %v674
        %v691 = vadd.f32 %v658, %v675
        %v692 = vadd.f32 %v659, %v676
        %v693 = vadd.f32 %v660, %v677
        %v694 = vadd.f32 %v661, %v678
        %v695 = vadd.f32 %v662, %v679
        %v696 = vadd.f32 %v663, %v680
        %v697 = vadd.f32 %v664, %v681
        %v698 = vadd.f32 %v665, %v682
        %v699 = vadd.f32 %v666, %v683
        %v700 = vadd.f32 %v667, %v684
        %v701 = vadd.f32 %v569, %v685
        %v702 = vadd.f32 %v570, %v686
        %v703 = vadd.f32 %v571, %v687
        %v704 = vadd.f32 %v572, %v688
        %v705 = vadd.f32 %v573, %v689
        %v706 = vadd.f32 %v574, %v690
        %v707 = vadd.f32 %v575, %v691
        %v708 = vadd.f32 %v576, %v692
        %v709 = vadd.f32 %v577, %v693
        %v710 = vadd.f32 %v578, %v694
        %v711 = vadd.f32 %v579, %v695
        %v712 = vadd.f32 %v580, %v696
        %v713 = vadd.f32 %v581, %v697
        %v714 = vadd.f32 %v582, %v698
        %v715 = vadd.f32 %v583, %v699
        %v716 = vadd.f32 %v584, %v700
        %v717 = vmul.f32 %v701, 0.05
        %v718 = vmul.f32 %v702, 0.05
        %v719 = vmul.f32 %v703, 0.05
        %v720 = vmul.f32 %v704, 0.05
        %v721 = vmul.f32 %v705, 0.05
        %v722 = vmul.f32 %v706, 0.05
        %v723 = vmul.f32 %v707, 0.05
        %v724 = vmul.f32 %v708, 0.05
        %v725 = vmul.f32 %v709, 0.05
        %v726 = vmul.f32 %v710, 0.05
        %v727 = vmul.f32 %v711, 0.05
        %v728 = vmul.f32 %v712, 0.05
        %v729 = vmul.f32 %v713, 0.05
        %v730 = vmul.f32 %v714, 0.05
        %v731 = vmul.f32 %v715, 0.05
        %v732 = vmul.f32 %v716, 0.05
        %v733 = vsub.f32 %v448, 0.3
        %v734 = vsub.f32 %v449, 0.3
        %v735 = vsub.f32 %v450, 0.3
        %v736 = vsub.f32 %v451, 0.3
        %v737 = vsub.f32 %v452, 0.3
        %v738 = vsub.f32 %v453, 0.3
        %v739 = vsub.f32 %v454, 0.3
        %v740 = vsub.f32 %v455, 0.3
        %v741 = vsub.f32 %v456, 0.3
        %v742 = vsub.f32 %v457, 0.3
        %v743 = vsub.f32 %v458, 0.3
        %v744 = vsub.f32 %v459, 0.3
        %v745 = vsub.f32 %v460, 0.3
        %v746 = vsub.f32 %v461, 0.3
        %v747 = vsub.f32 %v462, 0.3
        %v748 = vsub.f32 %v463, 0.3
        %v749 = vmul.f32 %v400, %v733
        %v750 = vmul.f32 %v401, %v734
        %v751 = vmul.f32 %v402, %v735
        %v752 = vmul.f32 %v403, %v736
        %v753 = vmul.f32 %v404, %v737
        %v754 = vmul.f32 %v405, %v738
        %v755 = vmul.f32 %v406, %v739
        %v756 = vmul.f32 %v407, %v740
        %v757 = vmul.f32 %v408, %v741
        %v758 = vmul.f32 %v409, %v742
        %v759 = vmul.f32 %v410, %v743
        %v760 = vmul.f32 %v411, %v744
        %v761 = vmul.f32 %v412, %v745
        %v762 = vmul.f32 %v413, %v746
        %v763 = vmul.f32 %v414, %v747
        %v764 = vmul.f32 %v415, %v748
        %v765 = vadd.f32 %v749, %v717
        %v766 = vadd.f32 %v750, %v718
        %v767 = vadd.f32 %v751, %v719
        %v768 = vadd.f32 %v752, %v720
        %v769 = vadd.f32 %v753, %v721
        %v770 = vadd.f32 %v754, %v722
        %v771 = vadd.f32 %v755, %v723
        %v772 = vadd.f32 %v756, %v724
        %v773 = vadd.f32 %v757, %v725
        %v774 = vadd.f32 %v758, %v726
        %v775 = vadd.f32 %v759, %v727
        %v776 = vadd.f32 %v760, %v728
        %v777 = vadd.f32 %v761, %v729
        %v778 = vadd.f32 %v762, %v730
        %v779 = vadd.f32 %v763, %v731
        %v780 = vadd.f32 %v764, %v732
        %v781 = vld [vmem:[%s331] sm:$0xff]
        %v782 = vld [vmem:[%s331 + $0x8] sm:$0xff]
        %v783 = vld [vmem:[%s340] sm:$0xff]
        %v784 = vld [vmem:[%s340 + $0x8] sm:$0xff]
        %v785 = vadd.f32 %v400, %v404
        %v786 = vadd.f32 %v401, %v405
        %v787 = vadd.f32 %v402, %v406
        %v788 = vadd.f32 %v403, %v407
        %v789 = vadd.f32 %v404, %v408
        %v790 = vadd.f32 %v405, %v409
        %v791 = vadd.f32 %v406, %v410
        %v792 = vadd.f32 %v407, %v411
        %v793 = vadd.f32 %v408, %v412
        %v794 = vadd.f32 %v409, %v413
        %v795 = vadd.f32 %v410, %v414
        %v796 = vadd.f32 %v411, %v415
        %v797 = vmul.f32 %v785, 0.05
        %v798 = vmul.f32 %v786, 0.05
        %v799 = vmul.f32 %v787, 0.05
        %v800 = vmul.f32 %v788, 0.05
        %v801 = vmul.f32 %v789, 0.05
        %v802 = vmul.f32 %v790, 0.05
        %v803 = vmul.f32 %v791, 0.05
        %v804 = vmul.f32 %v792, 0.05
        %v805 = vmul.f32 %v793, 0.05
        %v806 = vmul.f32 %v794, 0.05
        %v807 = vmul.f32 %v795, 0.05
        %v808 = vmul.f32 %v796, 0.05
        %v809 = vadd.f32 %v767, %v797
        %v810 = vadd.f32 %v768, %v798
        %v811 = vadd.f32 %v769, %v799
        %v812 = vadd.f32 %v770, %v800
        %v813 = vadd.f32 %v771, %v801
        %v814 = vadd.f32 %v772, %v802
        %v815 = vadd.f32 %v773, %v803
        %v816 = vadd.f32 %v774, %v804
        %v817 = vadd.f32 %v775, %v805
        %v818 = vadd.f32 %v776, %v806
        %v819 = vadd.f32 %v777, %v807
        %v820 = vadd.f32 %v778, %v808
        %s821 = scalar_lea.vmem %s388, 16 [#allocation10]
        %822 = vst [vmem:[%s821] sm:$0xff] %v809
        %823 = vst [vmem:[%s821 + $0x8] sm:$0xff] %v810
        %824 = vst [vmem:[%s821 + $0x10] sm:$0xff] %v811
        %825 = vst [vmem:[%s821 + $0x18] sm:$0xff] %v812
        %826 = vst [vmem:[%s821 + $0x20] sm:$0xff] %v813
        %827 = vst [vmem:[%s821 + $0x28] sm:$0xff] %v814
        %828 = vst [vmem:[%s821 + $0x30] sm:$0xff] %v815
        %829 = vst [vmem:[%s821 + $0x38] sm:$0xff] %v816
        %830 = vst [vmem:[%s821 + $0x40] sm:$0xff] %v817
        %831 = vst [vmem:[%s821 + $0x48] sm:$0xff] %v818
        %832 = vst [vmem:[%s821 + $0x50] sm:$0xff] %v819
        %833 = vst [vmem:[%s821 + $0x58] sm:$0xff] %v820
        %v834 = vadd.f32 %v781, %v402
        %v835 = vadd.f32 %v782, %v403
        %v836 = vmul.f32 %v834, 0.05
        %v837 = vmul.f32 %v835, 0.05
        %v838 = vadd.f32 %v765, %v836
        %v839 = vadd.f32 %v766, %v837
        %840 = vst [vmem:[%s388] sm:$0xff] %v838
        %841 = vst [vmem:[%s388 + $0x8] sm:$0xff] %v839
        %v842 = vadd.f32 %v412, %v783
        %v843 = vadd.f32 %v413, %v784
        %v844 = vmul.f32 %v842, 0.05
        %v845 = vmul.f32 %v843, 0.05
        %v846 = vadd.f32 %v779, %v844
        %v847 = vadd.f32 %v780, %v845
        %s848 = scalar_lea.vmem %s388, 112 [#allocation10]
        %849 = vst [vmem:[%s848] sm:$0xff] %v846
        %850 = vst [vmem:[%s848 + $0x8] sm:$0xff] %v847
        %s851 = sand.u32 %s177, 1
        %s852 = scalar_lea.sflag [#allocation4], %s851
        %s853 = sand.u32 %s177, 1
        %s854 = smul.addr %s853, 128
        %s855 = scalar_lea.vmem [#allocation10], %s854
        // Predicated region
        $region53: #{tpu_custom_call.1} parent=35 // pred_check
          %p856 = pneg %p187
        $region54: #{tpu_custom_call.1} parent=35 // pred_check_branch
          %858 = sbr.rel (%p856) target = $region56
        $region55: #{tpu_custom_call.1} parent=35 // pred_region
          %s859 = smul.u32 8, %s32
          %s861 = ssub.s32 2048, 2048
          %862 = vsyncadd %s852, %s861
          %s863 = smul.addr %s859, 2
          %s864 = smul.addr %s31, 16
          %s865 = sadd.s32 %s863, %s864
          %s866 = smul.addr %s865, 128
          %s867 = scalar_lea.hbm %s4, %s866
          %s868 = sshll.u32 %s855, 4
          %s869 = int_to_ptr.vmem [resolvable:$true] %s868
          %874 = dma.vmem_to_hbm [thread:$0]  %s869, 2048, %s867, %s852, 128, 128, 8
        $region56: #{tpu_custom_call.1} parent=35 // pred_fallthru
          _
      $region36: #{tpu_custom_call.1} parent=5 // pred_fallthru
        _
      %p875 = scmp.le.s32.totalorder 2, %s22
      // Predicated region
      $region57: #{tpu_custom_call.1} parent=5 // pred_check
        %p876 = pneg %p875
      $region58: #{tpu_custom_call.1} parent=5 // pred_check_branch
        %878 = sbr.rel (%p876) target = $region60
      $region59: #{tpu_custom_call.1} parent=5 // pred_region
        %s879 = ssub.s32 %s22, 2
        // Predicated region
        $region61: #{tpu_custom_call.1} parent=59 // pred_check
          %p880 = pneg %p193
        $region62: #{tpu_custom_call.1} parent=59 // pred_check_branch
          %882 = sbr.rel (%p880) target = $region64
        $region63: #{tpu_custom_call.1} parent=59 // pred_region
          %s883 = sand.u32 %s178, 1
          %s884 = scalar_lea.sflag [#allocation4], %s883
          %s885 = sand.u32 %s178, 1
          %s886 = smul.addr %s885, 128
          %s887 = scalar_lea.vmem [#allocation10], %s886
          %888 = dma.done %s884, 2048
        $region64: #{tpu_custom_call.1} parent=59 // pred_fallthru
          _
      $region60: #{tpu_custom_call.1} parent=5 // pred_fallthru
        _
    $region6: #{tpu_custom_call.1} parent=1 // loop_footer
      %s26 = sadd.s32 1, %s22
    $region7: #{tpu_custom_call.1} parent=1 // loop_footer_branch
      %21 = sbr.rel target = $region3
    $region8: #{tpu_custom_call.1} parent=1 // loop_exit
      _
    %889 = vsyncpa [#allocation3], 1
    %s890 = scalar_lea.sflag [#allocation3], 1
    %891 = vsyncpa %s890, 1
    %892 = vsyncpa [#allocation6], 1
    %s893 = scalar_lea.sflag [#allocation6], 1
    %894 = vsyncpa %s893, 1
    %895 = vsyncpa [#allocation9], 1
    %s896 = scalar_lea.sflag [#allocation9], 1
    %897 = vsyncpa %s896, 1
    %898 = vsyncpa [#allocation4], 1
    %s899 = scalar_lea.sflag [#allocation4], 1
    %900 = vsyncpa %s899, 1

</llo_original>
